<compile_context>
chip_gen: v5e
topology: v5e:2x2
jax: 0.10.0
libtpu: 0.0.40
codegen_flags: <defaults>
</compile_context>

<pallas_src>
import functools
import math

import jax
import jax.numpy as jnp
from jax.experimental import pallas as pl
from jax.experimental.pallas import tpu as pltpu

LANE = 128          # TPU lane width
SUBLANE = 8         # f32 sublane tile
TILE_B_MAX = 4096   # max batch rows per grid step (review: 512 was overhead-bound)
MEGACORE_SPLIT_B = 2048  # above this, force >=2 grid steps so v7x's 2 TCs both get work


def _round_up(x, m):
    return (x + m - 1) // m * m


def _cdiv(a, b):
    return (a + b - 1) // b


def _pad2(a, rows, cols):
    """Zero-pad a 2-D array up to (rows, cols)."""
    return jnp.pad(a, ((0, rows - a.shape[0]), (0, cols - a.shape[1])))


def backbone_kernel(x_ref, w0_ref, wres_ref, b_ref, o_ref):
    """One batch tile of the Backbone forward, fully resident in VMEM.

    Feature axes are zero-padded (dim1 -> 16 sublanes, dim2 -> 128 lanes), so every
    load/store is dense and the padded lanes stay exactly zero through the ReLUs and
    residual adds.  wres_ref holds the 4 residual weights stacked as (4, d2p, d2p);
    b_ref holds the 5 biases in rows 0..4 of an (8, d2p) slab.
    """
    b = b_ref[...]                 # (8, d2p) — one small load, sliced below
    b0, b1a, b1b, b2a, b2b = (b[0:1, :], b[1:2, :], b[2:3, :], b[3:4, :], b[4:5, :])

    x = x_ref[...]

    # Linear(dim1 -> dim2) + ReLU
    h = jnp.dot(x, w0_ref[...], preferred_element_type=jnp.float32) + b0
    h = jnp.maximum(h, 0.0)

    # FcResidualBlock #1: relu(h + fc2(relu(fc1(h))))
    y = jnp.dot(h, wres_ref[0], preferred_element_type=jnp.float32) + b1a
    y = jnp.maximum(y, 0.0)
    y = jnp.dot(y, wres_ref[1], preferred_element_type=jnp.float32) + b1b
    h = jnp.maximum(h + y, 0.0)

    # FcResidualBlock #2
    y = jnp.dot(h, wres_ref[2], preferred_element_type=jnp.float32) + b2a
    y = jnp.maximum(y, 0.0)
    y = jnp.dot(y, wres_ref[3], preferred_element_type=jnp.float32) + b2b
    o_ref[...] = jnp.maximum(h + y, 0.0).astype(o_ref.dtype)


def prepare_params(params, dim1, dim2):
    """One-time pad + stack of the weights (keeps pad ops out of the per-call hot path).

    Returns a dict with:
      w0   : (d1p, d2p)    first linear weight, zero-padded   (d1p = 16, d2p = 128)
      wres : (4, d2p, d2p) the 4 residual-block weights, stacked
      bias : (8, d2p)      rows 0..4 = b0, b1a, b1b, b2a, b2b; rows 5..7 zero
    """
    d1p = _round_up(dim1, 2 * SUBLANE)   # 9  -> 16 (sublane-aligned; NOT 128: x is HBM-bound)
    d2p = _round_up(dim2, LANE)          # 81 -> 128
    w0 = _pad2(params["w0"], d1p, d2p)
    wres = jnp.stack([
        _pad2(params["w1a"], d2p, d2p),
        _pad2(params["w1b"], d2p, d2p),
        _pad2(params["w2a"], d2p, d2p),
        _pad2(params["w2b"], d2p, d2p),
    ])
    bias = jnp.zeros((SUBLANE, d2p), jnp.float32)
    bias = bias.at[0, :dim2].set(params["b0"].reshape(-1))
    bias = bias.at[1, :dim2].set(params["b1a"].reshape(-1))
    bias = bias.at[2, :dim2].set(params["b1b"].reshape(-1))
    bias = bias.at[3, :dim2].set(params["b2a"].reshape(-1))
    bias = bias.at[4, :dim2].set(params["b2b"].reshape(-1))
    return dict(w0=w0, wres=wres, bias=bias)


@functools.partial(jax.jit, static_argnames=("dim2", "out_dtype"))
def backbone_forward(x_nchw, prepared, dim2, out_dtype=jnp.float32):
    """x_nchw: [B, C, H, W] float32 -> [B, dim2] out_dtype."""
    B = x_nchw.shape[0]
    x_flat = x_nchw.reshape(B, -1).astype(jnp.float32)   # torch.nn.Flatten (row-major)

    w0, wres, bias = prepared["w0"], prepared["wres"], prepared["bias"]
    d1p, d2p = w0.shape

    # Batch tiling: tile derived from B so padding waste is <= SUBLANE rows; for large B
    # force >=2 grid steps so the "parallel" axis shards across v7x's two TensorCores.
    n_tiles = _cdiv(B, TILE_B_MAX)
    if B >= MEGACORE_SPLIT_B:
        n_tiles = max(n_tiles, 2)
    tile_b = _round_up(_cdiv(B, n_tiles), SUBLANE)
    grid_b = _cdiv(B, tile_b)
    b_pad = grid_b * tile_b

    # Only x needs per-call padding now (padded rows are zeros -> sliced off below).
    x_p = _pad2(x_flat, b_pad, d1p)

    in_specs = [
        pl.BlockSpec((tile_b, d1p), lambda i: (i, 0)),          # x tile
        pl.BlockSpec((d1p, d2p), lambda i: (0, 0)),             # w0 (VMEM-resident)
        pl.BlockSpec((4, d2p, d2p), lambda i: (0, 0, 0)),       # stacked residual weights
        pl.BlockSpec((SUBLANE, d2p), lambda i: (0, 0)),         # stacked biases
    ]
    out_spec = pl.BlockSpec((tile_b, d2p), lambda i: (i, 0))

    out_itemsize = jnp.dtype(out_dtype).itemsize
    flops = 2 * b_pad * (d1p * d2p + 4 * d2p * d2p)
    bytes_accessed = (4 * b_pad * d1p + out_itemsize * b_pad * d2p
                      + 4 * (d1p * d2p + 4 * d2p * d2p + SUBLANE * d2p))

    out_padded = pl.pallas_call(
        backbone_kernel,
        out_shape=jax.ShapeDtypeStruct((b_pad, d2p), out_dtype),
        grid=(grid_b,),
        in_specs=in_specs,
        out_specs=out_spec,
        compiler_params=pltpu.CompilerParams(
            dimension_semantics=("parallel",)),
        cost_estimate=pl.CostEstimate(
            flops=flops, transcendentals=0, bytes_accessed=bytes_accessed),
    )(x_p, w0, wres, bias)

    # Slice back to the module's true output shape [B, dim2].
    return out_padded[:B, :dim2]


def _linear_params(key, fan_in, fan_out):
    """Deterministic init mimicking torch.nn.Linear default: U(-1/sqrt(fan_in), +1/sqrt(fan_in))."""
    kw, kb = jax.random.split(key)
    bound = 1.0 / math.sqrt(fan_in)
    w = jax.random.uniform(kw, (fan_in, fan_out), jnp.float32, -bound, bound)
    b = jax.random.uniform(kb, (1, fan_out), jnp.float32, -bound, bound)
    return w, b


def make_params(key, dim1, dim2):
    keys = jax.random.split(key, 5)
    w0, b0 = _linear_params(keys[0], dim1, dim2)
    w1a, b1a = _linear_params(keys[1], dim2, dim2)
    w1b, b1b = _linear_params(keys[2], dim2, dim2)
    w2a, b2a = _linear_params(keys[3], dim2, dim2)
    w2b, b2b = _linear_params(keys[4], dim2, dim2)
    return dict(w0=w0, b0=b0,
                w1a=w1a, b1a=b1a, w1b=w1b, b1b=b1b,
                w2a=w2a, b2a=b2a, w2b=w2b, b2b=b2b)


def reference_forward(x_nchw, p):
    """Pure-JAX reference of the PyTorch forward (f32-exact matmuls for the check)."""
    dot = functools.partial(jnp.dot, precision=jax.lax.Precision.HIGHEST,
                            preferred_element_type=jnp.float32)
    x = x_nchw.reshape(x_nchw.shape[0], -1)
    h = jnp.maximum(dot(x, p["w0"]) + p["b0"], 0.0)
    y = dot(jnp.maximum(dot(h, p["w1a"]) + p["b1a"], 0.0), p["w1b"]) + p["b1b"]
    h = jnp.maximum(h + y, 0.0)
    y = dot(jnp.maximum(dot(h, p["w2a"]) + p["b2a"], 0.0), p["w2b"]) + p["b2b"]
    return jnp.maximum(h + y, 0.0)


if __name__ == "__main__":
    # TicTacToe: state_shape = (N, 1, 3, 3), action_dim = 9  ->  dim1 = 9, dim2 = 81
    C, H, W = 1, 3, 3
    action_dim = 9
    dim1 = H * W
    dim2 = dim1 * action_dim

    key = jax.random.PRNGKey(0)
    kp, kx1, kx2, kx3 = jax.random.split(key, 4)
    params = make_params(kp, dim1, dim2)
    # Pad/stack the weights once, outside the per-call hot path.
    prepared = jax.tree_util.tree_map(jax.block_until_ready,
                                      prepare_params(params, dim1, dim2))

    # B=2: single aligned tile.  B=37: non-multiple batch (padding path).
    # B=2500: >= MEGACORE_SPLIT_B -> 2 grid steps (v7x megacore sharding path).
    for name, k, B in (("B=2", kx1, 2), ("B=37", kx2, 37), ("B=2500", kx3, 2500)):
        x = jax.random.normal(k, (B, C, H, W), jnp.float32)
        out = jax.block_until_ready(backbone_forward(x, prepared, dim2))
        ref = reference_forward(x, params)
        assert out.shape == (B, dim2), f"bad output shape ({name})"
        assert jnp.allclose(out, ref, atol=1e-5, rtol=1e-5), \
            f"mismatch vs JAX reference ({name})"

    print("KERNEL_OK")
</pallas_src>

<mosaic_0001>
module attributes {stable_mosaic.version = 11 : i64} {
  func.func @backbone_kernel(%arg0: i32, %arg1: memref<8x16xf32, #tpu.memory_space<vmem>>, %arg2: memref<16x128xf32, #tpu.memory_space<vmem>>, %arg3: memref<4x128x128xf32, #tpu.memory_space<vmem>>, %arg4: memref<8x128xf32, #tpu.memory_space<vmem>>, %arg5: memref<8x128xf32, #tpu.memory_space<vmem>>) attributes {dimension_semantics = [#tpu.dimension_semantics<parallel>], iteration_bounds = array<i64: 1>, scalar_prefetch = 0 : i64, scratch_operands = 0 : i64, tpu.core_type = #tpu.core_type<tc>, window_params = [{transform_indices = @transform_0, window_bounds = array<i64: 8, 16>}, {pipeline_mode = #tpu.pipeline_mode<synchronous>, transform_indices = @transform_1, window_bounds = array<i64: 16, 128>}, {pipeline_mode = #tpu.pipeline_mode<synchronous>, transform_indices = @transform_2, window_bounds = array<i64: 4, 128, 128>}, {pipeline_mode = #tpu.pipeline_mode<synchronous>, transform_indices = @transform_3, window_bounds = array<i64: 8, 128>}, {transform_indices = @transform_4, window_bounds = array<i64: 8, 128>}]} {
    %c0 = arith.constant 0 : index
    %c0_0 = arith.constant 0 : index
    %0 = vector.load %arg4[%c0, %c0_0] : memref<8x128xf32, #tpu.memory_space<vmem>>, vector<8x128xf32>
    %1 = vector.extract_strided_slice %0 {offsets = [0, 0], sizes = [1, 128], strides = [1, 1]} : vector<8x128xf32> to vector<1x128xf32>
    %2 = vector.extract_strided_slice %0 {offsets = [1, 0], sizes = [1, 128], strides = [1, 1]} : vector<8x128xf32> to vector<1x128xf32>
    %3 = vector.extract_strided_slice %0 {offsets = [2, 0], sizes = [1, 128], strides = [1, 1]} : vector<8x128xf32> to vector<1x128xf32>
    %4 = vector.extract_strided_slice %0 {offsets = [3, 0], sizes = [1, 128], strides = [1, 1]} : vector<8x128xf32> to vector<1x128xf32>
    %5 = vector.extract_strided_slice %0 {offsets = [4, 0], sizes = [1, 128], strides = [1, 1]} : vector<8x128xf32> to vector<1x128xf32>
    %c0_1 = arith.constant 0 : index
    %c0_2 = arith.constant 0 : index
    %6 = vector.load %arg1[%c0_1, %c0_2] : memref<8x16xf32, #tpu.memory_space<vmem>>, vector<8x16xf32>
    %c0_3 = arith.constant 0 : index
    %c0_4 = arith.constant 0 : index
    %7 = vector.load %arg2[%c0_3, %c0_4] : memref<16x128xf32, #tpu.memory_space<vmem>>, vector<16x128xf32>
    %cst = arith.constant dense<0.000000e+00> : vector<8x128xf32>
    %8 = tpu.matmul %6, %7, %cst {dimension_numbers = #tpu.dot_dimension_numbers<[1], [0], [0], [1], [0, 0, 1, 1], [], []>} : vector<8x16xf32>, vector<16x128xf32>, vector<8x128xf32> -> vector<8x128xf32>
    %9 = vector.broadcast %1 : vector<1x128xf32> to vector<8x128xf32>
    %10 = arith.addf %8, %9 : vector<8x128xf32>
    %cst_5 = arith.constant 0.000000e+00 : f32
    %11 = vector.broadcast %cst_5 : f32 to vector<8x128xf32>
    %12 = arith.maximumf %10, %11 : vector<8x128xf32>
    %c0_6 = arith.constant 0 : index
    %c0_7 = arith.constant 0 : index
    %c0_8 = arith.constant 0 : index
    %13 = vector.load %arg3[%c0_6, %c0_7, %c0_8] : memref<4x128x128xf32, #tpu.memory_space<vmem>>, vector<1x128x128xf32>
    %14 = vector.shape_cast %13 : vector<1x128x128xf32> to vector<128x128xf32>
    %cst_9 = arith.constant dense<0.000000e+00> : vector<8x128xf32>
    %15 = tpu.matmul %12, %14, %cst_9 {dimension_numbers = #tpu.dot_dimension_numbers<[1], [0], [0], [1], [0, 0, 1, 1], [], []>} : vector<8x128xf32>, vector<128x128xf32>, vector<8x128xf32> -> vector<8x128xf32>
    %16 = vector.broadcast %2 : vector<1x128xf32> to vector<8x128xf32>
    %17 = arith.addf %15, %16 : vector<8x128xf32>
    %cst_10 = arith.constant 0.000000e+00 : f32
    %18 = vector.broadcast %cst_10 : f32 to vector<8x128xf32>
    %19 = arith.maximumf %17, %18 : vector<8x128xf32>
    %c1 = arith.constant 1 : index
    %c0_11 = arith.constant 0 : index
    %c0_12 = arith.constant 0 : index
    %20 = vector.load %arg3[%c1, %c0_11, %c0_12] : memref<4x128x128xf32, #tpu.memory_space<vmem>>, vector<1x128x128xf32>
    %21 = vector.shape_cast %20 : vector<1x128x128xf32> to vector<128x128xf32>
    %cst_13 = arith.constant dense<0.000000e+00> : vector<8x128xf32>
    %22 = tpu.matmul %19, %21, %cst_13 {dimension_numbers = #tpu.dot_dimension_numbers<[1], [0], [0], [1], [0, 0, 1, 1], [], []>} : vector<8x128xf32>, vector<128x128xf32>, vector<8x128xf32> -> vector<8x128xf32>
    %23 = vector.broadcast %3 : vector<1x128xf32> to vector<8x128xf32>
    %24 = arith.addf %22, %23 : vector<8x128xf32>
    %25 = arith.addf %12, %24 : vector<8x128xf32>
    %cst_14 = arith.constant 0.000000e+00 : f32
    %26 = vector.broadcast %cst_14 : f32 to vector<8x128xf32>
    %27 = arith.maximumf %25, %26 : vector<8x128xf32>
    %c2 = arith.constant 2 : index
    %c0_15 = arith.constant 0 : index
    %c0_16 = arith.constant 0 : index
    %28 = vector.load %arg3[%c2, %c0_15, %c0_16] : memref<4x128x128xf32, #tpu.memory_space<vmem>>, vector<1x128x128xf32>
    %29 = vector.shape_cast %28 : vector<1x128x128xf32> to vector<128x128xf32>
    %cst_17 = arith.constant dense<0.000000e+00> : vector<8x128xf32>
    %30 = tpu.matmul %27, %29, %cst_17 {dimension_numbers = #tpu.dot_dimension_numbers<[1], [0], [0], [1], [0, 0, 1, 1], [], []>} : vector<8x128xf32>, vector<128x128xf32>, vector<8x128xf32> -> vector<8x128xf32>
    %31 = vector.broadcast %4 : vector<1x128xf32> to vector<8x128xf32>
    %32 = arith.addf %30, %31 : vector<8x128xf32>
    %cst_18 = arith.constant 0.000000e+00 : f32
    %33 = vector.broadcast %cst_18 : f32 to vector<8x128xf32>
    %34 = arith.maximumf %32, %33 : vector<8x128xf32>
    %c3 = arith.constant 3 : index
    %c0_19 = arith.constant 0 : index
    %c0_20 = arith.constant 0 : index
    %35 = vector.load %arg3[%c3, %c0_19, %c0_20] : memref<4x128x128xf32, #tpu.memory_space<vmem>>, vector<1x128x128xf32>
    %36 = vector.shape_cast %35 : vector<1x128x128xf32> to vector<128x128xf32>
    %cst_21 = arith.constant dense<0.000000e+00> : vector<8x128xf32>
    %37 = tpu.matmul %34, %36, %cst_21 {dimension_numbers = #tpu.dot_dimension_numbers<[1], [0], [0], [1], [0, 0, 1, 1], [], []>} : vector<8x128xf32>, vector<128x128xf32>, vector<8x128xf32> -> vector<8x128xf32>
    %38 = vector.broadcast %5 : vector<1x128xf32> to vector<8x128xf32>
    %39 = arith.addf %37, %38 : vector<8x128xf32>
    %40 = arith.addf %27, %39 : vector<8x128xf32>
    %cst_22 = arith.constant 0.000000e+00 : f32
    %41 = vector.broadcast %cst_22 : f32 to vector<8x128xf32>
    %42 = arith.maximumf %40, %41 : vector<8x128xf32>
    %c0_23 = arith.constant 0 : index
    %c0_24 = arith.constant 0 : index
    %43 = vector.load %arg5[%c0_23, %c0_24] : memref<8x128xf32, #tpu.memory_space<vmem>>, vector<8x128xf32>
    tpu.vector_store %arg5[%c0_23, %c0_24], %42 {strides = array<i32>} : memref<8x128xf32, #tpu.memory_space<vmem>>, vector<8x128xf32>,
    return
  }
  func.func @transform_0(%arg0: i32) -> (i32, i32) {
    %c0_i32 = arith.constant 0 : i32
    %c0_i32_0 = arith.constant 0 : i32
    return %arg0, %c0_i32 : i32, i32
  }
  func.func @transform_1(%arg0: i32) -> (i32, i32) {
    %c0_i32 = arith.constant 0 : i32
    %c0_i32_0 = arith.constant 0 : i32
    %c0_i32_1 = arith.constant 0 : i32
    return %c0_i32, %c0_i32_0 : i32, i32
  }
  func.func @transform_2(%arg0: i32) -> (i32, i32, i32) {
    %c0_i32 = arith.constant 0 : i32
    %c0_i32_0 = arith.constant 0 : i32
    %c0_i32_1 = arith.constant 0 : i32
    %c0_i32_2 = arith.constant 0 : i32
    return %c0_i32, %c0_i32_0, %c0_i32_1 : i32, i32, i32
  }
  func.func @transform_3(%arg0: i32) -> (i32, i32) {
    %c0_i32 = arith.constant 0 : i32
    %c0_i32_0 = arith.constant 0 : i32
    %c0_i32_1 = arith.constant 0 : i32
    return %c0_i32, %c0_i32_0 : i32, i32
  }
  func.func @transform_4(%arg0: i32) -> (i32, i32) {
    %c0_i32 = arith.constant 0 : i32
    %c0_i32_0 = arith.constant 0 : i32
    return %arg0, %c0_i32 : i32, i32
  }
}

</mosaic_0001>

<llo_original>
// kernel: backbone_forward.1
$region0: #{backbone_forward.1}
  #allocation0 [shape = 'u32[]', space=smem, size = 0x4, offset = 0x4, fixed_abs, tag = 'smem constant byte address 0x4 - core index']
  #allocation1 [shape = 'u32[72,128]{1,0:T(1,128)}', space=vmem, size = 0x9000, scoped, tag = 'internal scratch']
  %s0 = inlined_call_operand.vmem [shape: f32[8,16], index: 0, kind: input, shape index: {}]
  %s1 = inlined_call_operand.vmem [shape: f32[16,128], index: 1, kind: input, shape index: {}]
  %s2 = inlined_call_operand.hbm [shape: f32[4,128,128], index: 2, kind: input, shape index: {}]
  %s3 = inlined_call_operand.vmem [shape: f32[8,128], index: 3, kind: input, shape index: {}]
  %s4 = inlined_call_operand.vmem [shape: f32[8,128], index: 4, kind: output, shape index: {}]
  %s5 = sld [smem:[#allocation0]]
  $region30: #{backbone_forward.1} parent=0
    _
  %s7 = ssub.s32 1, %s5
  %s8 = scalar_select 0, %s7, %s5
  $region1: #{backbone_forward.1} parent=0
    #allocation2 [shape = 'u8[262144]{0}', space=vmem, size = 0x40000, scoped, tag = 'input window, operand 2, single buffered']
    #allocation3 [shape = 's32[1]{0}', space=sflag, size = 0x4, scoped, tag = 'scoped memory for backbone_forward.1']
    %9 = vsyncpa [#allocation3], 0
    // Predicated region
    $region2: #{backbone_forward.1} parent=1 // pred_check
      _
    $region3: #{backbone_forward.1} parent=1 // pred_check_branch
      %11 = sbr.rel (0) target = $region5
    $region4: #{backbone_forward.1} parent=1 // pred_region
      _
    $region5: #{backbone_forward.1} parent=1 // pred_fallthru
      _
    // Predicated region
    $region6: #{backbone_forward.1} parent=1 // pred_check
      _
    $region7: #{backbone_forward.1} parent=1 // pred_check_branch
      %13 = sbr.rel (0) target = $region9
    $region8: #{backbone_forward.1} parent=1 // pred_region
      _
    $region9: #{backbone_forward.1} parent=1 // pred_fallthru
      _
    // Predicated region
    $region10: #{backbone_forward.1} parent=1 // pred_check
      _
    $region11: #{backbone_forward.1} parent=1 // pred_check_branch
      %15 = sbr.rel (0) target = $region13
    $region12: #{backbone_forward.1} parent=1 // pred_region
      %17 = vsyncadd [#allocation3], 0
      %s18 = sshll.u32 %s2, 4
      %s19 = int_to_ptr.hbm [resolvable:$true] %s18
      %s20 = sshll.u32 [#allocation2], 4
      %s21 = int_to_ptr.vmem [resolvable:$true] %s20
      %26 = dma.hbm_to_vmem [thread:$0]  %s19, 8192, %s21, [#allocation3], 128, 128, 8
    $region13: #{backbone_forward.1} parent=1 // pred_fallthru
      _
    // Predicated region
    $region14: #{backbone_forward.1} parent=1 // pred_check
      _
    $region15: #{backbone_forward.1} parent=1 // pred_check_branch
      %28 = sbr.rel (0) target = $region17
    $region16: #{backbone_forward.1} parent=1 // pred_region
      _
    $region17: #{backbone_forward.1} parent=1 // pred_fallthru
      _
    // Predicated region
    $region18: #{backbone_forward.1} parent=1 // pred_check
      _
    $region19: #{backbone_forward.1} parent=1 // pred_check_branch
      %30 = sbr.rel (0) target = $region21
    $region20: #{backbone_forward.1} parent=1 // pred_region
      %32 = dma.done [#allocation3], 8192
    $region21: #{backbone_forward.1} parent=1 // pred_fallthru
      _
    %v33 = vld [vmem:[%s3] sm:$0xff]
    %v34 = vld [vmem:[%s0] sm:$0xff]
    %v35 = vld [vmem:[%s1] sm:$0xff]
    %v36 = vld [vmem:[%s1 + $0x8] sm:$0xff]
    %v37 = vperm.slane %v33, 0
    %vm38 = vcmask 130048
    %v40 = vsel %vm38, %v34, 0
    %42 = vmatpush.msra.mxu0 0.0
    %43 = vmatpush.msra.mxu0 0.0
    %44 = vmatpush.msra.mxu0 0.0
    %45 = vmatpush.msra.mxu0 0.0
    %46 = vmatpush.msra.mxu0 0.0
    %47 = vmatpush.msra.mxu0 0.0
    %48 = vmatpush.msra.mxu0 0.0
    %49 = vmatpush.msra.mxu0 0.0
    %50 = vmatpush.msra.mxu0 0.0
    %51 = vmatpush.msra.mxu0 0.0
    %52 = vmatpush.msra.mxu0 0.0
    %53 = vmatpush.msra.mxu0 0.0
    %54 = vmatpush.msra.mxu0 0.0
    %55 = vmatpush.msra.mxu0 0.0
    %56 = vmatpush.msra.mxu0 %v36
    %57 = vmatpush.msra.mxu0 %v35
    %58 = vmatmul.f32.gmra.mxu0 %v40
    %v59 = vpop.f32.mrf.mxu0
    %v60 = vadd.f32 %v37, %v59
    %61 = vdwg.mxu0
    %v62 = vmax.f32 %v60, 0.0
    %v63 = vld [vmem:[#allocation2] sm:$0xff]
    %v64 = vld [vmem:[#allocation2 + $0x8] sm:$0xff]
    %v65 = vld [vmem:[#allocation2 + $0x10] sm:$0xff]
    %v66 = vld [vmem:[#allocation2 + $0x18] sm:$0xff]
    %v67 = vld [vmem:[#allocation2 + $0x20] sm:$0xff]
    %v68 = vld [vmem:[#allocation2 + $0x28] sm:$0xff]
    %v69 = vld [vmem:[#allocation2 + $0x30] sm:$0xff]
    %v70 = vld [vmem:[#allocation2 + $0x38] sm:$0xff]
    %v71 = vld [vmem:[#allocation2 + $0x40] sm:$0xff]
    %v72 = vld [vmem:[#allocation2 + $0x48] sm:$0xff]
    %v73 = vld [vmem:[#allocation2 + $0x50] sm:$0xff]
    %v74 = vld [vmem:[#allocation2 + $0x58] sm:$0xff]
    %v75 = vld [vmem:[#allocation2 + $0x60] sm:$0xff]
    %v76 = vld [vmem:[#allocation2 + $0x68] sm:$0xff]
    %v77 = vld [vmem:[#allocation2 + $0x70] sm:$0xff]
    %v78 = vld [vmem:[#allocation2 + $0x78] sm:$0xff]
    %v79 = vperm.slane %v33, 1
    %80 = vmatpush.msra.mxu0 %v78
    %81 = vmatpush.msra.mxu0 %v77
    %82 = vmatpush.msra.mxu0 %v76
    %83 = vmatpush.msra.mxu0 %v75
    %84 = vmatpush.msra.mxu0 %v74
    %85 = vmatpush.msra.mxu0 %v73
    %86 = vmatpush.msra.mxu0 %v72
    %87 = vmatpush.msra.mxu0 %v71
    %88 = vmatpush.msra.mxu0 %v70
    %89 = vmatpush.msra.mxu0 %v69
    %90 = vmatpush.msra.mxu0 %v68
    %91 = vmatpush.msra.mxu0 %v67
    %92 = vmatpush.msra.mxu0 %v66
    %93 = vmatpush.msra.mxu0 %v65
    %94 = vmatpush.msra.mxu0 %v64
    %95 = vmatpush.msra.mxu0 %v63
    %96 = vmatmul.f32.gmra.mxu0 %v62
    %v97 = vpop.f32.mrf.mxu0
    %v98 = vadd.f32 %v79, %v97
    %99 = vdwg.mxu0
    %v100 = vmax.f32 %v98, 0.0
    %s101 = scalar_lea.vmem [#allocation2], 128
    %v102 = vld [vmem:[%s101] sm:$0xff]
    %v103 = vld [vmem:[%s101 + $0x8] sm:$0xff]
    %v104 = vld [vmem:[%s101 + $0x10] sm:$0xff]
    %v105 = vld [vmem:[%s101 + $0x18] sm:$0xff]
    %v106 = vld [vmem:[%s101 + $0x20] sm:$0xff]
    %v107 = vld [vmem:[%s101 + $0x28] sm:$0xff]
    %v108 = vld [vmem:[%s101 + $0x30] sm:$0xff]
    %v109 = vld [vmem:[%s101 + $0x38] sm:$0xff]
    %v110 = vld [vmem:[%s101 + $0x40] sm:$0xff]
    %v111 = vld [vmem:[%s101 + $0x48] sm:$0xff]
    %v112 = vld [vmem:[%s101 + $0x50] sm:$0xff]
    %v113 = vld [vmem:[%s101 + $0x58] sm:$0xff]
    %v114 = vld [vmem:[%s101 + $0x60] sm:$0xff]
    %v115 = vld [vmem:[%s101 + $0x68] sm:$0xff]
    %v116 = vld [vmem:[%s101 + $0x70] sm:$0xff]
    %v117 = vld [vmem:[%s101 + $0x78] sm:$0xff]
    %v118 = vperm.slane %v33, 2
    %119 = vmatpush.msra.mxu0 %v117
    %120 = vmatpush.msra.mxu0 %v116
    %121 = vmatpush.msra.mxu0 %v115
    %122 = vmatpush.msra.mxu0 %v114
    %123 = vmatpush.msra.mxu0 %v113
    %124 = vmatpush.msra.mxu0 %v112
    %125 = vmatpush.msra.mxu0 %v111
    %126 = vmatpush.msra.mxu0 %v110
    %127 = vmatpush.msra.mxu0 %v109
    %128 = vmatpush.msra.mxu0 %v108
    %129 = vmatpush.msra.mxu0 %v107
    %130 = vmatpush.msra.mxu0 %v106
    %131 = vmatpush.msra.mxu0 %v105
    %132 = vmatpush.msra.mxu0 %v104
    %133 = vmatpush.msra.mxu0 %v103
    %134 = vmatpush.msra.mxu0 %v102
    %135 = vmatmul.f32.gmra.mxu0 %v100
    %v136 = vpop.f32.mrf.mxu0
    %v137 = vadd.f32 %v118, %v136
    %138 = vdwg.mxu0
    %v139 = vadd.f32 %v62, %v137
    %v140 = vmax.f32 %v139, 0.0
    %s141 = scalar_lea.vmem [#allocation2], 256
    %v142 = vld [vmem:[%s141] sm:$0xff]
    %v143 = vld [vmem:[%s141 + $0x8] sm:$0xff]
    %v144 = vld [vmem:[%s141 + $0x10] sm:$0xff]
    %v145 = vld [vmem:[%s141 + $0x18] sm:$0xff]
    %v146 = vld [vmem:[%s141 + $0x20] sm:$0xff]
    %v147 = vld [vmem:[%s141 + $0x28] sm:$0xff]
    %v148 = vld [vmem:[%s141 + $0x30] sm:$0xff]
    %v149 = vld [vmem:[%s141 + $0x38] sm:$0xff]
    %v150 = vld [vmem:[%s141 + $0x40] sm:$0xff]
    %v151 = vld [vmem:[%s141 + $0x48] sm:$0xff]
    %v152 = vld [vmem:[%s141 + $0x50] sm:$0xff]
    %v153 = vld [vmem:[%s141 + $0x58] sm:$0xff]
    %v154 = vld [vmem:[%s141 + $0x60] sm:$0xff]
    %v155 = vld [vmem:[%s141 + $0x68] sm:$0xff]
    %v156 = vld [vmem:[%s141 + $0x70] sm:$0xff]
    %v157 = vld [vmem:[%s141 + $0x78] sm:$0xff]
    %v158 = vperm.slane %v33, 3
    %159 = vmatpush.msra.mxu0 %v157
    %160 = vmatpush.msra.mxu0 %v156
    %161 = vmatpush.msra.mxu0 %v155
    %162 = vmatpush.msra.mxu0 %v154
    %163 = vmatpush.msra.mxu0 %v153
    %164 = vmatpush.msra.mxu0 %v152
    %165 = vmatpush.msra.mxu0 %v151
    %166 = vmatpush.msra.mxu0 %v150
    %167 = vmatpush.msra.mxu0 %v149
    %168 = vmatpush.msra.mxu0 %v148
    %169 = vmatpush.msra.mxu0 %v147
    %170 = vmatpush.msra.mxu0 %v146
    %171 = vmatpush.msra.mxu0 %v145
    %172 = vmatpush.msra.mxu0 %v144
    %173 = vmatpush.msra.mxu0 %v143
    %174 = vmatpush.msra.mxu0 %v142
    %175 = vmatmul.f32.gmra.mxu0 %v140
    %v176 = vpop.f32.mrf.mxu0
    %v177 = vadd.f32 %v158, %v176
    %178 = vdwg.mxu0
    %v179 = vmax.f32 %v177, 0.0
    %s180 = scalar_lea.vmem [#allocation2], 384
    %v181 = vld [vmem:[%s180] sm:$0xff]
    %v182 = vld [vmem:[%s180 + $0x8] sm:$0xff]
    %v183 = vld [vmem:[%s180 + $0x10] sm:$0xff]
    %v184 = vld [vmem:[%s180 + $0x18] sm:$0xff]
    %v185 = vld [vmem:[%s180 + $0x20] sm:$0xff]
    %v186 = vld [vmem:[%s180 + $0x28] sm:$0xff]
    %v187 = vld [vmem:[%s180 + $0x30] sm:$0xff]
    %v188 = vld [vmem:[%s180 + $0x38] sm:$0xff]
    %v189 = vld [vmem:[%s180 + $0x40] sm:$0xff]
    %v190 = vld [vmem:[%s180 + $0x48] sm:$0xff]
    %v191 = vld [vmem:[%s180 + $0x50] sm:$0xff]
    %v192 = vld [vmem:[%s180 + $0x58] sm:$0xff]
    %v193 = vld [vmem:[%s180 + $0x60] sm:$0xff]
    %v194 = vld [vmem:[%s180 + $0x68] sm:$0xff]
    %v195 = vld [vmem:[%s180 + $0x70] sm:$0xff]
    %v196 = vld [vmem:[%s180 + $0x78] sm:$0xff]
    %v197 = vperm.slane %v33, 4
    %198 = vmatpush.msra.mxu0 %v196
    %199 = vmatpush.msra.mxu0 %v195
    %200 = vmatpush.msra.mxu0 %v194
    %201 = vmatpush.msra.mxu0 %v193
    %202 = vmatpush.msra.mxu0 %v192
    %203 = vmatpush.msra.mxu0 %v191
    %204 = vmatpush.msra.mxu0 %v190
    %205 = vmatpush.msra.mxu0 %v189
    %206 = vmatpush.msra.mxu0 %v188
    %207 = vmatpush.msra.mxu0 %v187
    %208 = vmatpush.msra.mxu0 %v186
    %209 = vmatpush.msra.mxu0 %v185
    %210 = vmatpush.msra.mxu0 %v184
    %211 = vmatpush.msra.mxu0 %v183
    %212 = vmatpush.msra.mxu0 %v182
    %213 = vmatpush.msra.mxu0 %v181
    %214 = vmatmul.f32.gmra.mxu0 %v179
    %v215 = vpop.f32.mrf.mxu0
    %v216 = vadd.f32 %v197, %v215
    %217 = vdwg.mxu0
    %v218 = vadd.f32 %v140, %v216
    %v219 = vmax.f32 %v218, 0.0
    %220 = vst [vmem:[%s4] sm:$0xff] %v219
    // Predicated region
    $region22: #{backbone_forward.1} parent=1 // pred_check
      _
    $region23: #{backbone_forward.1} parent=1 // pred_check_branch
      %222 = sbr.rel (0) target = $region25
    $region24: #{backbone_forward.1} parent=1 // pred_region
      _
    $region25: #{backbone_forward.1} parent=1 // pred_fallthru
      _
    // Predicated region
    $region26: #{backbone_forward.1} parent=1 // pred_check
      _
    $region27: #{backbone_forward.1} parent=1 // pred_check_branch
      %224 = sbr.rel (0) target = $region29
    $region28: #{backbone_forward.1} parent=1 // pred_region
      _
    $region29: #{backbone_forward.1} parent=1 // pred_fallthru
      _
    %225 = vsyncpa [#allocation3], 1

</llo_original>
